<compile_context>
chip_gen: v7x
topology: tpu7x:2x2x1
jax: 0.10.0
libtpu: 0.0.40
codegen_flags: <defaults>
</compile_context>

<pallas_src>
import functools

import jax
import jax.numpy as jnp
import numpy as np
from jax.experimental import pallas as pl
from jax.experimental.pallas import tpu as pltpu

EPS = 1e-5   # eps of both BatchNorm2d instances
S = 5        # sub-spectral groups in SubSpectralNorm(planes, 5)


def _bc_block_kernel(x_ref, p_ref, w1_ref, o_ref, *, n, f, t):
    """BroadcastedBlock forward on a lane-dense (C, F*N*T) slab.

    Lane order is (f, n, t):  lane = f*(N*T) + n*T + t.
    """
    fs = f // S                  # frequency rows per sub-spectral band
    nt = n * t                   # lanes per frequency row
    nft = f * nt                 # total lanes
    bw = fs * nt                 # lanes per sub-spectral band (128 for toy shape)

    x = x_ref[...]               # (C, NFT) float32
    p = p_ref[...]               # (C, 18) packed per-channel parameters
    c = x.shape[0]

    # Packed per-channel params -> (C, 1)/(C, S) blocks (broadcast over lanes).
    wf0, wf1, wf2 = p[:, 0:1], p[:, 1:2], p[:, 2:3]           # freq_dw_conv taps
    wt0, wt1, wt2 = p[:, 3:4], p[:, 4:5], p[:, 5:6]           # temp_dw_conv taps
    ssng = p[:, 6:6 + S]                                      # SSN gamma (C, S)
    ssnb = p[:, 6 + S:6 + 2 * S]                              # SSN beta  (C, S)
    bng = p[:, 6 + 2 * S:7 + 2 * S]                           # BN gamma  (C, 1)
    bnb = p[:, 7 + 2 * S:8 + 2 * S]                           # BN beta   (C, 1)

    # ---- freq_dw_conv: depthwise k=(3,1), zero pad along F -----------------
    # A +-1 shift along F is a lane shift by +-NT, built as zero block + slice.
    # TODO(synk): at production sizes make N*T a multiple of 128 (pad T/N in
    # the wrapper) so these shifts and the per-row slices stay vreg-aligned.
    zrow = jnp.zeros((c, nt), dtype=x.dtype)
    x_fm1 = jnp.concatenate([zrow, x[:, :nft - nt]], axis=1)   # value at f-1
    x_fp1 = jnp.concatenate([x[:, nt:], zrow], axis=1)         # value at f+1
    y = wf1 * x + wf0 * x_fm1 + wf2 * x_fp1                    # (C, NFT)

    # ---- SubSpectralNorm (BatchNorm2d(C*S) over the (N, C*S, F/S, T) view) --
    # Band s <-> contiguous lane block [s*bw, (s+1)*bw); training-mode stats
    # over (N, F/S, T); one-pass sum/sumsq + folded scale/shift FMA (rsqrt on
    # the EUP).  Fused per band: (a) the partial residual x + aux goes straight
    # to o_ref (128-lane-aligned stores at the toy shape), (b) the bands are
    # accumulated into band_sum for the later frequency mean.  No full-slab
    # `aux` temporary and no second pass over the normalized activations.
    inv_cnt = 1.0 / float(n * fs * t)
    band_sum = jnp.zeros((c, bw), dtype=jnp.float32)
    for s in range(S):
        lo = s * bw
        ys = y[:, lo:lo + bw]                                        # (C, bw)
        mu = jnp.sum(ys, axis=1, keepdims=True) * inv_cnt            # (C, 1)
        # One-pass sumsq variance; clamp guards tiny negative cancellation.
        var = jnp.maximum(
            jnp.sum(ys * ys, axis=1, keepdims=True) * inv_cnt - mu * mu, 0.0)
        sc = ssng[:, s:s + 1] * jax.lax.rsqrt(var + EPS)
        sh = ssnb[:, s:s + 1] - mu * sc
        band = ys * sc + sh                                          # aux band
        o_ref[:, lo:lo + bw] = x[:, lo:lo + bw] + band               # x + aux
        band_sum = band_sum + band

    # ---- mean over frequency (dim 2), keepdim -> (C, N*T) ------------------
    # Fold the per-band sum down to one frequency row (fs adds of (C, NT)).
    msum = band_sum[:, 0:nt]
    for fi in range(1, fs):
        msum = msum + band_sum[:, fi * nt:(fi + 1) * nt]
    m = msum * (1.0 / f)                                             # (C, NT)

    # ---- temp_dw_conv: depthwise k=(1,3), zero pad along T -----------------
    # (n, t) are flattened on lanes; in-kernel iota mask stops neighbouring
    # batch elements leaking into each other at the t boundaries.
    tt = jax.lax.broadcasted_iota(jnp.int32, (c, nt), 1) % t
    zcol = jnp.zeros((c, 1), dtype=m.dtype)
    m_tm1 = jnp.where(tt == 0, 0.0,
                      jnp.concatenate([zcol, m[:, :nt - 1]], axis=1))
    m_tp1 = jnp.where(tt == t - 1, 0.0,
                      jnp.concatenate([m[:, 1:], zcol], axis=1))
    tcv = wt1 * m + wt0 * m_tm1 + wt2 * m_tp1                        # (C, NT)

    # ---- BatchNorm2d(C), training-mode stats over (N, 1, T), folded affine -
    inv_nt = 1.0 / float(nt)
    bmu = jnp.sum(tcv, axis=1, keepdims=True) * inv_nt
    bvar = jnp.maximum(
        jnp.sum(tcv * tcv, axis=1, keepdims=True) * inv_nt - bmu * bmu, 0.0)
    bsc = bng * jax.lax.rsqrt(bvar + EPS)
    bsh = bnb - bmu * bsc
    bno = tcv * bsc + bsh

    # ---- SiLU (swish) -------------------------------------------------------
    sw = bno * jax.nn.sigmoid(bno)                                   # (C, NT)

    # ---- conv1x1 (channel mixing), no bias ----------------------------------
    # Small C: C unrolled VPU FMAs (outer products) on the resident slab — a
    # 4x4 MXU matmul would be <0.1% utilization plus result-FIFO latency.
    # Large C: MXU matmul (default precision; re-validate tolerance if used).
    w1 = w1_ref[...]                                                 # (C, C)
    if c >= 64:
        c1 = jnp.dot(w1, sw, preferred_element_type=jnp.float32)
    else:
        c1 = w1[:, 0:1] * sw[0:1, :]
        for i in range(1, c):
            c1 = c1 + w1[:, i:i + 1] * sw[i:i + 1, :]                # (C, NT)

    # ---- Dropout2d(p=0.0) == identity; residual + ReLU epilogue -------------
    # Per-band (128-lane-aligned) read-modify-write of o_ref: no (C, NFT)
    # broadcast temporary, only a (C, bw) c1_band built from fs copies.
    c1_band = jnp.concatenate([c1] * fs, axis=1)                     # (C, bw)
    for s in range(S):
        lo = s * bw
        o_ref[:, lo:lo + bw] = jnp.maximum(o_ref[:, lo:lo + bw] + c1_band, 0.0)


def broadcasted_block_slab(x2d, params, w1, *, n, f, t):
    """BroadcastedBlock forward on a lane-dense (C, F*N*T) slab.

    Chained blocks should call this directly so activations stay in slab
    layout and the HBM transposes of the NCHW wrapper are skipped.
    """
    C, NFT = x2d.shape
    kernel = functools.partial(_bc_block_kernel, n=n, f=f, t=t)
    return pl.pallas_call(
        kernel,
        out_shape=jax.ShapeDtypeStruct((C, NFT), jnp.float32),
        # Single-tile, grid-less kernel: whole (tiny) arrays live in VMEM.
        # TODO(synk): beyond ~a few MiB per slab (esp. v7x's 64 MiB VMEM),
        # introduce an F-band or batch grid instead of raising this limit.
        in_specs=[pl.BlockSpec(memory_space=pltpu.MemorySpace.VMEM)] * 3,
        out_specs=pl.BlockSpec(memory_space=pltpu.MemorySpace.VMEM),
        compiler_params=pltpu.CompilerParams(
            vmem_limit_bytes=32 * 1024 * 1024),
    )(x2d, params, w1)


@jax.jit
def broadcasted_block(x, wf, ssng, ssnb, wt, bng, bnb, w1):
    """BroadcastedBlock forward.  x: (N, C, F, T) float32 (NCHW, like PyTorch).

    One-off convenience wrapper: relays NCHW -> (C, F*N*T) slab and back.
    """
    N, C, Fd, T = x.shape
    assert Fd % S == 0, "frequency dim must be divisible by 5 (SubSpectralNorm)"
    NT = N * T
    NFT = Fd * NT

    # Lane-dense layout: channels on sublanes, (f, n, t) flattened onto lanes.
    x2d = jnp.transpose(x, (1, 2, 0, 3)).reshape(C, NFT)

    # Pack all small per-channel parameters into a single (C, 18) input:
    # [wf(3) | wt(3) | ssn_gamma(5) | ssn_beta(5) | bn_gamma(1) | bn_beta(1)]
    params = jnp.concatenate(
        [wf, wt, ssng, ssnb, bng.reshape(C, 1), bnb.reshape(C, 1)], axis=1)

    out2d = broadcasted_block_slab(x2d, params, w1, n=N, f=Fd, t=T)

    # Back to NCHW.
    return jnp.transpose(out2d.reshape(C, Fd, N, T), (2, 0, 1, 3))


def _reference(x, wf, ssng, ssnb, wt, bng, bnb, w1):
    """Pure-JAX reference mirroring the PyTorch forward (for validation)."""
    N, C, Fd, T = x.shape
    FS = Fd // S
    xp = jnp.pad(x, ((0, 0), (0, 0), (1, 1), (0, 0)))
    out = sum(wf[:, k].reshape(1, C, 1, 1) * xp[:, :, k:k + Fd, :] for k in range(3))
    o5 = out.reshape(N, C, S, FS, T)
    mu = o5.mean(axis=(0, 3, 4), keepdims=True)
    var = ((o5 - mu) ** 2).mean(axis=(0, 3, 4), keepdims=True)
    aux = ((o5 - mu) / jnp.sqrt(var + EPS)
           * ssng[None, :, :, None, None]
           + ssnb[None, :, :, None, None]).reshape(N, C, Fd, T)
    m = aux.mean(axis=2, keepdims=True)
    mp = jnp.pad(m, ((0, 0), (0, 0), (0, 0), (1, 1)))
    tc = sum(wt[:, k].reshape(1, C, 1, 1) * mp[:, :, :, k:k + T] for k in range(3))
    mu2 = tc.mean(axis=(0, 2, 3), keepdims=True)
    var2 = ((tc - mu2) ** 2).mean(axis=(0, 2, 3), keepdims=True)
    bno = (tc - mu2) / jnp.sqrt(var2 + EPS) * bng.reshape(1, C, 1, 1) + bnb.reshape(1, C, 1, 1)
    sw = bno * jax.nn.sigmoid(bno)
    c1 = jnp.einsum('oi,nift->noft', w1, sw, precision=jax.lax.Precision.HIGHEST)
    return jnp.maximum(x + aux + c1, 0.0)


if __name__ == "__main__":
    key = jax.random.PRNGKey(0)
    N, C, Fd, T = 2, 4, 20, 16          # F must be divisible by S=5
    ks = jax.random.split(key, 8)
    x = jax.random.normal(ks[0], (N, C, Fd, T), jnp.float32)
    # Parameters (deterministic synthetic init):
    wf = 0.3 * jax.random.normal(ks[1], (C, 3), jnp.float32)          # freq_dw_conv (C,1,3,1)
    ssng = 1.0 + 0.1 * jax.random.normal(ks[2], (C, S), jnp.float32)  # SSN BN gamma (C*S,)
    ssnb = 0.1 * jax.random.normal(ks[3], (C, S), jnp.float32)        # SSN BN beta  (C*S,)
    wt = 0.3 * jax.random.normal(ks[4], (C, 3), jnp.float32)          # temp_dw_conv (C,1,1,3)
    bng = 1.0 + 0.1 * jax.random.normal(ks[5], (C, 1), jnp.float32)   # bn gamma (C,)
    bnb = 0.1 * jax.random.normal(ks[6], (C, 1), jnp.float32)         # bn beta  (C,)
    w1 = 0.3 * jax.random.normal(ks[7], (C, C), jnp.float32)          # conv1x1 (C,C,1,1)

    out = broadcasted_block(x, wf, ssng, ssnb, wt, bng, bnb, w1)
    out = jax.block_until_ready(out)

    ref = _reference(x, wf, ssng, ssnb, wt, bng, bnb, w1)
    np.testing.assert_allclose(np.asarray(out), np.asarray(ref), rtol=1e-4, atol=1e-4)
    print("KERNEL_OK")
</pallas_src>

<mosaic_0001>
module attributes {stable_mosaic.version = 11 : i64} {
  func.func @_bc_block_kernel(%arg0: memref<4x640xf32, #tpu.memory_space<vmem>>, %arg1: memref<4x18xf32, #tpu.memory_space<vmem>>, %arg2: memref<4x4xf32, #tpu.memory_space<vmem>>, %arg3: memref<4x640xf32, #tpu.memory_space<vmem>>) attributes {dimension_semantics = [], scalar_prefetch = 0 : i64, scratch_operands = 0 : i64, tpu.core_type = #tpu.core_type<tc>} {
    %c0 = arith.constant 0 : index
    %c0_0 = arith.constant 0 : index
    %0 = vector.load %arg0[%c0, %c0_0] : memref<4x640xf32, #tpu.memory_space<vmem>>, vector<4x640xf32>
    %c0_1 = arith.constant 0 : index
    %c0_2 = arith.constant 0 : index
    %1 = vector.load %arg1[%c0_1, %c0_2] : memref<4x18xf32, #tpu.memory_space<vmem>>, vector<4x18xf32>
    %2 = vector.extract_strided_slice %1 {offsets = [0, 0], sizes = [4, 1], strides = [1, 1]} : vector<4x18xf32> to vector<4x1xf32>
    %3 = vector.extract_strided_slice %1 {offsets = [0, 1], sizes = [4, 1], strides = [1, 1]} : vector<4x18xf32> to vector<4x1xf32>
    %4 = vector.extract_strided_slice %1 {offsets = [0, 2], sizes = [4, 1], strides = [1, 1]} : vector<4x18xf32> to vector<4x1xf32>
    %5 = vector.extract_strided_slice %1 {offsets = [0, 3], sizes = [4, 1], strides = [1, 1]} : vector<4x18xf32> to vector<4x1xf32>
    %6 = vector.extract_strided_slice %1 {offsets = [0, 4], sizes = [4, 1], strides = [1, 1]} : vector<4x18xf32> to vector<4x1xf32>
    %7 = vector.extract_strided_slice %1 {offsets = [0, 5], sizes = [4, 1], strides = [1, 1]} : vector<4x18xf32> to vector<4x1xf32>
    %8 = vector.extract_strided_slice %1 {offsets = [0, 6], sizes = [4, 5], strides = [1, 1]} : vector<4x18xf32> to vector<4x5xf32>
    %9 = vector.extract_strided_slice %1 {offsets = [0, 11], sizes = [4, 5], strides = [1, 1]} : vector<4x18xf32> to vector<4x5xf32>
    %10 = vector.extract_strided_slice %1 {offsets = [0, 16], sizes = [4, 1], strides = [1, 1]} : vector<4x18xf32> to vector<4x1xf32>
    %11 = vector.extract_strided_slice %1 {offsets = [0, 17], sizes = [4, 1], strides = [1, 1]} : vector<4x18xf32> to vector<4x1xf32>
    %cst = arith.constant 0.000000e+00 : f32
    %12 = vector.broadcast %cst : f32 to vector<4x32xf32>
    %13 = vector.extract_strided_slice %0 {offsets = [0, 0], sizes = [4, 608], strides = [1, 1]} : vector<4x640xf32> to vector<4x608xf32>
    %14 = tpu.concatenate %12, %13 in 1 : vector<4x32xf32>, vector<4x608xf32> -> vector<4x640xf32>
    %15 = vector.extract_strided_slice %0 {offsets = [0, 32], sizes = [4, 608], strides = [1, 1]} : vector<4x640xf32> to vector<4x608xf32>
    %16 = tpu.concatenate %15, %12 in 1 : vector<4x608xf32>, vector<4x32xf32> -> vector<4x640xf32>
    %17 = vector.broadcast %3 : vector<4x1xf32> to vector<4x640xf32>
    %18 = arith.mulf %17, %0 : vector<4x640xf32>
    %19 = vector.broadcast %2 : vector<4x1xf32> to vector<4x640xf32>
    %20 = arith.mulf %19, %14 : vector<4x640xf32>
    %21 = arith.addf %18, %20 : vector<4x640xf32>
    %22 = vector.broadcast %4 : vector<4x1xf32> to vector<4x640xf32>
    %23 = arith.mulf %22, %16 : vector<4x640xf32>
    %24 = arith.addf %21, %23 : vector<4x640xf32>
    %cst_3 = arith.constant 0.000000e+00 : f32
    %25 = vector.broadcast %cst_3 : f32 to vector<4x128xf32>
    %26 = vector.extract_strided_slice %24 {offsets = [0, 0], sizes = [4, 128], strides = [1, 1]} : vector<4x640xf32> to vector<4x128xf32>
    %cst_4 = arith.constant dense<0.000000e+00> : vector<4xf32>
    %27 = vector.multi_reduction <add>, %26, %cst_4 [1] : vector<4x128xf32> to vector<4xf32>
    %28 = vector.shape_cast %27 : vector<4xf32> to vector<4x1xf32>
    %cst_5 = arith.constant 7.812500e-03 : f32
    %29 = vector.broadcast %cst_5 : f32 to vector<4x1xf32>
    %30 = arith.mulf %28, %29 : vector<4x1xf32>
    %31 = arith.mulf %26, %26 : vector<4x128xf32>
    %cst_6 = arith.constant dense<0.000000e+00> : vector<4xf32>
    %32 = vector.multi_reduction <add>, %31, %cst_6 [1] : vector<4x128xf32> to vector<4xf32>
    %33 = vector.shape_cast %32 : vector<4xf32> to vector<4x1xf32>
    %cst_7 = arith.constant 7.812500e-03 : f32
    %34 = vector.broadcast %cst_7 : f32 to vector<4x1xf32>
    %35 = arith.mulf %33, %34 : vector<4x1xf32>
    %36 = arith.mulf %30, %30 : vector<4x1xf32>
    %37 = arith.subf %35, %36 : vector<4x1xf32>
    %cst_8 = arith.constant 0.000000e+00 : f32
    %38 = vector.broadcast %cst_8 : f32 to vector<4x1xf32>
    %39 = arith.maximumf %37, %38 : vector<4x1xf32>
    %40 = vector.extract_strided_slice %8 {offsets = [0, 0], sizes = [4, 1], strides = [1, 1]} : vector<4x5xf32> to vector<4x1xf32>
    %cst_9 = arith.constant 9.99999974E-6 : f32
    %41 = vector.broadcast %cst_9 : f32 to vector<4x1xf32>
    %42 = arith.addf %39, %41 : vector<4x1xf32>
    %43 = math.rsqrt %42 : vector<4x1xf32>
    %44 = arith.mulf %40, %43 : vector<4x1xf32>
    %45 = vector.extract_strided_slice %9 {offsets = [0, 0], sizes = [4, 1], strides = [1, 1]} : vector<4x5xf32> to vector<4x1xf32>
    %46 = arith.mulf %30, %44 : vector<4x1xf32>
    %47 = arith.subf %45, %46 : vector<4x1xf32>
    %48 = vector.broadcast %44 : vector<4x1xf32> to vector<4x128xf32>
    %49 = arith.mulf %26, %48 : vector<4x128xf32>
    %50 = vector.broadcast %47 : vector<4x1xf32> to vector<4x128xf32>
    %51 = arith.addf %49, %50 : vector<4x128xf32>
    %52 = vector.extract_strided_slice %0 {offsets = [0, 0], sizes = [4, 128], strides = [1, 1]} : vector<4x640xf32> to vector<4x128xf32>
    %53 = arith.addf %52, %51 : vector<4x128xf32>
    %c0_10 = arith.constant 0 : index
    %c0_11 = arith.constant 0 : index
    %54 = vector.load %arg3[%c0_10, %c0_11] : memref<4x640xf32, #tpu.memory_space<vmem>>, vector<4x128xf32>
    tpu.vector_store %arg3[%c0_10, %c0_11], %53 {strides = array<i32>} : memref<4x640xf32, #tpu.memory_space<vmem>>, vector<4x128xf32>,
    %55 = arith.addf %25, %51 : vector<4x128xf32>
    %56 = vector.extract_strided_slice %24 {offsets = [0, 128], sizes = [4, 128], strides = [1, 1]} : vector<4x640xf32> to vector<4x128xf32>
    %cst_12 = arith.constant dense<0.000000e+00> : vector<4xf32>
    %57 = vector.multi_reduction <add>, %56, %cst_12 [1] : vector<4x128xf32> to vector<4xf32>
    %58 = vector.shape_cast %57 : vector<4xf32> to vector<4x1xf32>
    %cst_13 = arith.constant 7.812500e-03 : f32
    %59 = vector.broadcast %cst_13 : f32 to vector<4x1xf32>
    %60 = arith.mulf %58, %59 : vector<4x1xf32>
    %61 = arith.mulf %56, %56 : vector<4x128xf32>
    %cst_14 = arith.constant dense<0.000000e+00> : vector<4xf32>
    %62 = vector.multi_reduction <add>, %61, %cst_14 [1] : vector<4x128xf32> to vector<4xf32>
    %63 = vector.shape_cast %62 : vector<4xf32> to vector<4x1xf32>
    %cst_15 = arith.constant 7.812500e-03 : f32
    %64 = vector.broadcast %cst_15 : f32 to vector<4x1xf32>
    %65 = arith.mulf %63, %64 : vector<4x1xf32>
    %66 = arith.mulf %60, %60 : vector<4x1xf32>
    %67 = arith.subf %65, %66 : vector<4x1xf32>
    %cst_16 = arith.constant 0.000000e+00 : f32
    %68 = vector.broadcast %cst_16 : f32 to vector<4x1xf32>
    %69 = arith.maximumf %67, %68 : vector<4x1xf32>
    %70 = vector.extract_strided_slice %8 {offsets = [0, 1], sizes = [4, 1], strides = [1, 1]} : vector<4x5xf32> to vector<4x1xf32>
    %cst_17 = arith.constant 9.99999974E-6 : f32
    %71 = vector.broadcast %cst_17 : f32 to vector<4x1xf32>
    %72 = arith.addf %69, %71 : vector<4x1xf32>
    %73 = math.rsqrt %72 : vector<4x1xf32>
    %74 = arith.mulf %70, %73 : vector<4x1xf32>
    %75 = vector.extract_strided_slice %9 {offsets = [0, 1], sizes = [4, 1], strides = [1, 1]} : vector<4x5xf32> to vector<4x1xf32>
    %76 = arith.mulf %60, %74 : vector<4x1xf32>
    %77 = arith.subf %75, %76 : vector<4x1xf32>
    %78 = vector.broadcast %74 : vector<4x1xf32> to vector<4x128xf32>
    %79 = arith.mulf %56, %78 : vector<4x128xf32>
    %80 = vector.broadcast %77 : vector<4x1xf32> to vector<4x128xf32>
    %81 = arith.addf %79, %80 : vector<4x128xf32>
    %82 = vector.extract_strided_slice %0 {offsets = [0, 128], sizes = [4, 128], strides = [1, 1]} : vector<4x640xf32> to vector<4x128xf32>
    %83 = arith.addf %82, %81 : vector<4x128xf32>
    %c0_18 = arith.constant 0 : index
    %c128 = arith.constant 128 : index
    %84 = vector.load %arg3[%c0_18, %c128] : memref<4x640xf32, #tpu.memory_space<vmem>>, vector<4x128xf32>
    tpu.vector_store %arg3[%c0_18, %c128], %83 {strides = array<i32>} : memref<4x640xf32, #tpu.memory_space<vmem>>, vector<4x128xf32>,
    %85 = arith.addf %55, %81 : vector<4x128xf32>
    %86 = vector.extract_strided_slice %24 {offsets = [0, 256], sizes = [4, 128], strides = [1, 1]} : vector<4x640xf32> to vector<4x128xf32>
    %cst_19 = arith.constant dense<0.000000e+00> : vector<4xf32>
    %87 = vector.multi_reduction <add>, %86, %cst_19 [1] : vector<4x128xf32> to vector<4xf32>
    %88 = vector.shape_cast %87 : vector<4xf32> to vector<4x1xf32>
    %cst_20 = arith.constant 7.812500e-03 : f32
    %89 = vector.broadcast %cst_20 : f32 to vector<4x1xf32>
    %90 = arith.mulf %88, %89 : vector<4x1xf32>
    %91 = arith.mulf %86, %86 : vector<4x128xf32>
    %cst_21 = arith.constant dense<0.000000e+00> : vector<4xf32>
    %92 = vector.multi_reduction <add>, %91, %cst_21 [1] : vector<4x128xf32> to vector<4xf32>
    %93 = vector.shape_cast %92 : vector<4xf32> to vector<4x1xf32>
    %cst_22 = arith.constant 7.812500e-03 : f32
    %94 = vector.broadcast %cst_22 : f32 to vector<4x1xf32>
    %95 = arith.mulf %93, %94 : vector<4x1xf32>
    %96 = arith.mulf %90, %90 : vector<4x1xf32>
    %97 = arith.subf %95, %96 : vector<4x1xf32>
    %cst_23 = arith.constant 0.000000e+00 : f32
    %98 = vector.broadcast %cst_23 : f32 to vector<4x1xf32>
    %99 = arith.maximumf %97, %98 : vector<4x1xf32>
    %100 = vector.extract_strided_slice %8 {offsets = [0, 2], sizes = [4, 1], strides = [1, 1]} : vector<4x5xf32> to vector<4x1xf32>
    %cst_24 = arith.constant 9.99999974E-6 : f32
    %101 = vector.broadcast %cst_24 : f32 to vector<4x1xf32>
    %102 = arith.addf %99, %101 : vector<4x1xf32>
    %103 = math.rsqrt %102 : vector<4x1xf32>
    %104 = arith.mulf %100, %103 : vector<4x1xf32>
    %105 = vector.extract_strided_slice %9 {offsets = [0, 2], sizes = [4, 1], strides = [1, 1]} : vector<4x5xf32> to vector<4x1xf32>
    %106 = arith.mulf %90, %104 : vector<4x1xf32>
    %107 = arith.subf %105, %106 : vector<4x1xf32>
    %108 = vector.broadcast %104 : vector<4x1xf32> to vector<4x128xf32>
    %109 = arith.mulf %86, %108 : vector<4x128xf32>
    %110 = vector.broadcast %107 : vector<4x1xf32> to vector<4x128xf32>
    %111 = arith.addf %109, %110 : vector<4x128xf32>
    %112 = vector.extract_strided_slice %0 {offsets = [0, 256], sizes = [4, 128], strides = [1, 1]} : vector<4x640xf32> to vector<4x128xf32>
    %113 = arith.addf %112, %111 : vector<4x128xf32>
    %c0_25 = arith.constant 0 : index
    %c256 = arith.constant 256 : index
    %114 = vector.load %arg3[%c0_25, %c256] : memref<4x640xf32, #tpu.memory_space<vmem>>, vector<4x128xf32>
    tpu.vector_store %arg3[%c0_25, %c256], %113 {strides = array<i32>} : memref<4x640xf32, #tpu.memory_space<vmem>>, vector<4x128xf32>,
    %115 = arith.addf %85, %111 : vector<4x128xf32>
    %116 = vector.extract_strided_slice %24 {offsets = [0, 384], sizes = [4, 128], strides = [1, 1]} : vector<4x640xf32> to vector<4x128xf32>
    %cst_26 = arith.constant dense<0.000000e+00> : vector<4xf32>
    %117 = vector.multi_reduction <add>, %116, %cst_26 [1] : vector<4x128xf32> to vector<4xf32>
    %118 = vector.shape_cast %117 : vector<4xf32> to vector<4x1xf32>
    %cst_27 = arith.constant 7.812500e-03 : f32
    %119 = vector.broadcast %cst_27 : f32 to vector<4x1xf32>
    %120 = arith.mulf %118, %119 : vector<4x1xf32>
    %121 = arith.mulf %116, %116 : vector<4x128xf32>
    %cst_28 = arith.constant dense<0.000000e+00> : vector<4xf32>
    %122 = vector.multi_reduction <add>, %121, %cst_28 [1] : vector<4x128xf32> to vector<4xf32>
    %123 = vector.shape_cast %122 : vector<4xf32> to vector<4x1xf32>
    %cst_29 = arith.constant 7.812500e-03 : f32
    %124 = vector.broadcast %cst_29 : f32 to vector<4x1xf32>
    %125 = arith.mulf %123, %124 : vector<4x1xf32>
    %126 = arith.mulf %120, %120 : vector<4x1xf32>
    %127 = arith.subf %125, %126 : vector<4x1xf32>
    %cst_30 = arith.constant 0.000000e+00 : f32
    %128 = vector.broadcast %cst_30 : f32 to vector<4x1xf32>
    %129 = arith.maximumf %127, %128 : vector<4x1xf32>
    %130 = vector.extract_strided_slice %8 {offsets = [0, 3], sizes = [4, 1], strides = [1, 1]} : vector<4x5xf32> to vector<4x1xf32>
    %cst_31 = arith.constant 9.99999974E-6 : f32
    %131 = vector.broadcast %cst_31 : f32 to vector<4x1xf32>
    %132 = arith.addf %129, %131 : vector<4x1xf32>
    %133 = math.rsqrt %132 : vector<4x1xf32>
    %134 = arith.mulf %130, %133 : vector<4x1xf32>
    %135 = vector.extract_strided_slice %9 {offsets = [0, 3], sizes = [4, 1], strides = [1, 1]} : vector<4x5xf32> to vector<4x1xf32>
    %136 = arith.mulf %120, %134 : vector<4x1xf32>
    %137 = arith.subf %135, %136 : vector<4x1xf32>
    %138 = vector.broadcast %134 : vector<4x1xf32> to vector<4x128xf32>
    %139 = arith.mulf %116, %138 : vector<4x128xf32>
    %140 = vector.broadcast %137 : vector<4x1xf32> to vector<4x128xf32>
    %141 = arith.addf %139, %140 : vector<4x128xf32>
    %142 = vector.extract_strided_slice %0 {offsets = [0, 384], sizes = [4, 128], strides = [1, 1]} : vector<4x640xf32> to vector<4x128xf32>
    %143 = arith.addf %142, %141 : vector<4x128xf32>
    %c0_32 = arith.constant 0 : index
    %c384 = arith.constant 384 : index
    %144 = vector.load %arg3[%c0_32, %c384] : memref<4x640xf32, #tpu.memory_space<vmem>>, vector<4x128xf32>
    tpu.vector_store %arg3[%c0_32, %c384], %143 {strides = array<i32>} : memref<4x640xf32, #tpu.memory_space<vmem>>, vector<4x128xf32>,
    %145 = arith.addf %115, %141 : vector<4x128xf32>
    %146 = vector.extract_strided_slice %24 {offsets = [0, 512], sizes = [4, 128], strides = [1, 1]} : vector<4x640xf32> to vector<4x128xf32>
    %cst_33 = arith.constant dense<0.000000e+00> : vector<4xf32>
    %147 = vector.multi_reduction <add>, %146, %cst_33 [1] : vector<4x128xf32> to vector<4xf32>
    %148 = vector.shape_cast %147 : vector<4xf32> to vector<4x1xf32>
    %cst_34 = arith.constant 7.812500e-03 : f32
    %149 = vector.broadcast %cst_34 : f32 to vector<4x1xf32>
    %150 = arith.mulf %148, %149 : vector<4x1xf32>
    %151 = arith.mulf %146, %146 : vector<4x128xf32>
    %cst_35 = arith.constant dense<0.000000e+00> : vector<4xf32>
    %152 = vector.multi_reduction <add>, %151, %cst_35 [1] : vector<4x128xf32> to vector<4xf32>
    %153 = vector.shape_cast %152 : vector<4xf32> to vector<4x1xf32>
    %cst_36 = arith.constant 7.812500e-03 : f32
    %154 = vector.broadcast %cst_36 : f32 to vector<4x1xf32>
    %155 = arith.mulf %153, %154 : vector<4x1xf32>
    %156 = arith.mulf %150, %150 : vector<4x1xf32>
    %157 = arith.subf %155, %156 : vector<4x1xf32>
    %cst_37 = arith.constant 0.000000e+00 : f32
    %158 = vector.broadcast %cst_37 : f32 to vector<4x1xf32>
    %159 = arith.maximumf %157, %158 : vector<4x1xf32>
    %160 = vector.extract_strided_slice %8 {offsets = [0, 4], sizes = [4, 1], strides = [1, 1]} : vector<4x5xf32> to vector<4x1xf32>
    %cst_38 = arith.constant 9.99999974E-6 : f32
    %161 = vector.broadcast %cst_38 : f32 to vector<4x1xf32>
    %162 = arith.addf %159, %161 : vector<4x1xf32>
    %163 = math.rsqrt %162 : vector<4x1xf32>
    %164 = arith.mulf %160, %163 : vector<4x1xf32>
    %165 = vector.extract_strided_slice %9 {offsets = [0, 4], sizes = [4, 1], strides = [1, 1]} : vector<4x5xf32> to vector<4x1xf32>
    %166 = arith.mulf %150, %164 : vector<4x1xf32>
    %167 = arith.subf %165, %166 : vector<4x1xf32>
    %168 = vector.broadcast %164 : vector<4x1xf32> to vector<4x128xf32>
    %169 = arith.mulf %146, %168 : vector<4x128xf32>
    %170 = vector.broadcast %167 : vector<4x1xf32> to vector<4x128xf32>
    %171 = arith.addf %169, %170 : vector<4x128xf32>
    %172 = vector.extract_strided_slice %0 {offsets = [0, 512], sizes = [4, 128], strides = [1, 1]} : vector<4x640xf32> to vector<4x128xf32>
    %173 = arith.addf %172, %171 : vector<4x128xf32>
    %c0_39 = arith.constant 0 : index
    %c512 = arith.constant 512 : index
    %174 = vector.load %arg3[%c0_39, %c512] : memref<4x640xf32, #tpu.memory_space<vmem>>, vector<4x128xf32>
    tpu.vector_store %arg3[%c0_39, %c512], %173 {strides = array<i32>} : memref<4x640xf32, #tpu.memory_space<vmem>>, vector<4x128xf32>,
    %175 = arith.addf %145, %171 : vector<4x128xf32>
    %176 = vector.extract_strided_slice %175 {offsets = [0, 0], sizes = [4, 32], strides = [1, 1]} : vector<4x128xf32> to vector<4x32xf32>
    %177 = vector.extract_strided_slice %175 {offsets = [0, 32], sizes = [4, 32], strides = [1, 1]} : vector<4x128xf32> to vector<4x32xf32>
    %178 = arith.addf %176, %177 : vector<4x32xf32>
    %179 = vector.extract_strided_slice %175 {offsets = [0, 64], sizes = [4, 32], strides = [1, 1]} : vector<4x128xf32> to vector<4x32xf32>
    %180 = arith.addf %178, %179 : vector<4x32xf32>
    %181 = vector.extract_strided_slice %175 {offsets = [0, 96], sizes = [4, 32], strides = [1, 1]} : vector<4x128xf32> to vector<4x32xf32>
    %182 = arith.addf %180, %181 : vector<4x32xf32>
    %cst_40 = arith.constant 5.000000e-02 : f32
    %183 = vector.broadcast %cst_40 : f32 to vector<4x32xf32>
    %184 = arith.mulf %182, %183 : vector<4x32xf32>
    %185 = tpu.iota {dimensions = array<i32: 1>} : vector<4x32xi32>
    %c16_i32 = arith.constant 16 : i32
    %c0_i32 = arith.constant 0 : i32
    %186 = arith.cmpi eq, %c16_i32, %c0_i32 : i32
    %c1_i32 = arith.constant 1 : i32
    %187 = arith.select %186, %c1_i32, %c16_i32 : i32
    %188 = vector.broadcast %187 : i32 to vector<4x32xi32>
    %189 = arith.remsi %185, %188 : vector<4x32xi32>
    %c0_i32_41 = arith.constant 0 : i32
    %190 = vector.broadcast %c0_i32_41 : i32 to vector<4x32xi32>
    %191 = arith.cmpi ne, %189, %190 : vector<4x32xi32>
    %c0_i32_42 = arith.constant 0 : i32
    %192 = vector.broadcast %c0_i32_42 : i32 to vector<4x32xi32>
    %193 = arith.cmpi slt, %189, %192 : vector<4x32xi32>
    %c0_i32_43 = arith.constant 0 : i32
    %194 = arith.cmpi slt, %187, %c0_i32_43 : i32
    %195 = vector.broadcast %194 : i1 to vector<4x32xi1>
    %196 = vector.broadcast %195 : vector<4x32xi1> to vector<4x32xi1>
    %197 = arith.xori %193, %196 : vector<4x32xi1>
    %198 = arith.andi %197, %191 : vector<4x32xi1>
    %199 = vector.broadcast %187 : i32 to vector<4x32xi32>
    %200 = arith.addi %189, %199 : vector<4x32xi32>
    %201 = arith.select %198, %200, %189 : vector<4x32xi1>, vector<4x32xi32>
    %cst_44 = arith.constant 0.000000e+00 : f32
    %202 = vector.broadcast %cst_44 : f32 to vector<4x1xf32>
    %c0_i32_45 = arith.constant 0 : i32
    %203 = vector.broadcast %c0_i32_45 : i32 to vector<4x32xi32>
    %204 = arith.cmpi eq, %201, %203 : vector<4x32xi32>
    %205 = vector.extract_strided_slice %184 {offsets = [0, 0], sizes = [4, 31], strides = [1, 1]} : vector<4x32xf32> to vector<4x31xf32>
    %206 = tpu.concatenate %202, %205 in 1 : vector<4x1xf32>, vector<4x31xf32> -> vector<4x32xf32>
    %cst_46 = arith.constant 0.000000e+00 : f32
    %207 = vector.broadcast %cst_46 : f32 to vector<4x32xf32>
    %208 = arith.select %204, %207, %206 : vector<4x32xi1>, vector<4x32xf32>
    %c15_i32 = arith.constant 15 : i32
    %209 = vector.broadcast %c15_i32 : i32 to vector<4x32xi32>
    %210 = arith.cmpi eq, %201, %209 : vector<4x32xi32>
    %211 = vector.extract_strided_slice %184 {offsets = [0, 1], sizes = [4, 31], strides = [1, 1]} : vector<4x32xf32> to vector<4x31xf32>
    %212 = tpu.concatenate %211, %202 in 1 : vector<4x31xf32>, vector<4x1xf32> -> vector<4x32xf32>
    %cst_47 = arith.constant 0.000000e+00 : f32
    %213 = vector.broadcast %cst_47 : f32 to vector<4x32xf32>
    %214 = arith.select %210, %213, %212 : vector<4x32xi1>, vector<4x32xf32>
    %215 = vector.broadcast %6 : vector<4x1xf32> to vector<4x32xf32>
    %216 = arith.mulf %215, %184 : vector<4x32xf32>
    %217 = vector.broadcast %5 : vector<4x1xf32> to vector<4x32xf32>
    %218 = arith.mulf %217, %208 : vector<4x32xf32>
    %219 = arith.addf %216, %218 : vector<4x32xf32>
    %220 = vector.broadcast %7 : vector<4x1xf32> to vector<4x32xf32>
    %221 = arith.mulf %220, %214 : vector<4x32xf32>
    %222 = arith.addf %219, %221 : vector<4x32xf32>
    %cst_48 = arith.constant dense<0.000000e+00> : vector<4xf32>
    %223 = vector.multi_reduction <add>, %222, %cst_48 [1] : vector<4x32xf32> to vector<4xf32>
    %224 = vector.shape_cast %223 : vector<4xf32> to vector<4x1xf32>
    %cst_49 = arith.constant 3.125000e-02 : f32
    %225 = vector.broadcast %cst_49 : f32 to vector<4x1xf32>
    %226 = arith.mulf %224, %225 : vector<4x1xf32>
    %227 = arith.mulf %222, %222 : vector<4x32xf32>
    %cst_50 = arith.constant dense<0.000000e+00> : vector<4xf32>
    %228 = vector.multi_reduction <add>, %227, %cst_50 [1] : vector<4x32xf32> to vector<4xf32>
    %229 = vector.shape_cast %228 : vector<4xf32> to vector<4x1xf32>
    %cst_51 = arith.constant 3.125000e-02 : f32
    %230 = vector.broadcast %cst_51 : f32 to vector<4x1xf32>
    %231 = arith.mulf %229, %230 : vector<4x1xf32>
    %232 = arith.mulf %226, %226 : vector<4x1xf32>
    %233 = arith.subf %231, %232 : vector<4x1xf32>
    %cst_52 = arith.constant 0.000000e+00 : f32
    %234 = vector.broadcast %cst_52 : f32 to vector<4x1xf32>
    %235 = arith.maximumf %233, %234 : vector<4x1xf32>
    %cst_53 = arith.constant 9.99999974E-6 : f32
    %236 = vector.broadcast %cst_53 : f32 to vector<4x1xf32>
    %237 = arith.addf %235, %236 : vector<4x1xf32>
    %238 = math.rsqrt %237 : vector<4x1xf32>
    %239 = arith.mulf %10, %238 : vector<4x1xf32>
    %240 = arith.mulf %226, %239 : vector<4x1xf32>
    %241 = arith.subf %11, %240 : vector<4x1xf32>
    %242 = vector.broadcast %239 : vector<4x1xf32> to vector<4x32xf32>
    %243 = arith.mulf %222, %242 : vector<4x32xf32>
    %244 = vector.broadcast %241 : vector<4x1xf32> to vector<4x32xf32>
    %245 = arith.addf %243, %244 : vector<4x32xf32>
    %246 = arith.negf %245 : vector<4x32xf32>
    %247 = math.exp %246 : vector<4x32xf32>
    %cst_54 = arith.constant 1.000000e+00 : f32
    %248 = vector.broadcast %cst_54 : f32 to vector<4x32xf32>
    %249 = arith.addf %248, %247 : vector<4x32xf32>
    %250 = arith.divf %248, %249 : vector<4x32xf32>
    %251 = arith.mulf %245, %250 : vector<4x32xf32>
    %c0_55 = arith.constant 0 : index
    %c0_56 = arith.constant 0 : index
    %252 = vector.load %arg2[%c0_55, %c0_56] : memref<4x4xf32, #tpu.memory_space<vmem>>, vector<4x4xf32>
    %253 = vector.extract_strided_slice %252 {offsets = [0, 0], sizes = [4, 1], strides = [1, 1]} : vector<4x4xf32> to vector<4x1xf32>
    %254 = vector.extract_strided_slice %251 {offsets = [0, 0], sizes = [1, 32], strides = [1, 1]} : vector<4x32xf32> to vector<1x32xf32>
    %255 = vector.broadcast %253 : vector<4x1xf32> to vector<4x32xf32>
    %256 = vector.broadcast %254 : vector<1x32xf32> to vector<4x32xf32>
    %257 = arith.mulf %255, %256 : vector<4x32xf32>
    %258 = vector.extract_strided_slice %252 {offsets = [0, 1], sizes = [4, 1], strides = [1, 1]} : vector<4x4xf32> to vector<4x1xf32>
    %259 = vector.extract_strided_slice %251 {offsets = [1, 0], sizes = [1, 32], strides = [1, 1]} : vector<4x32xf32> to vector<1x32xf32>
    %260 = vector.broadcast %258 : vector<4x1xf32> to vector<4x32xf32>
    %261 = vector.broadcast %259 : vector<1x32xf32> to vector<4x32xf32>
    %262 = arith.mulf %260, %261 : vector<4x32xf32>
    %263 = arith.addf %257, %262 : vector<4x32xf32>
    %264 = vector.extract_strided_slice %252 {offsets = [0, 2], sizes = [4, 1], strides = [1, 1]} : vector<4x4xf32> to vector<4x1xf32>
    %265 = vector.extract_strided_slice %251 {offsets = [2, 0], sizes = [1, 32], strides = [1, 1]} : vector<4x32xf32> to vector<1x32xf32>
    %266 = vector.broadcast %264 : vector<4x1xf32> to vector<4x32xf32>
    %267 = vector.broadcast %265 : vector<1x32xf32> to vector<4x32xf32>
    %268 = arith.mulf %266, %267 : vector<4x32xf32>
    %269 = arith.addf %263, %268 : vector<4x32xf32>
    %270 = vector.extract_strided_slice %252 {offsets = [0, 3], sizes = [4, 1], strides = [1, 1]} : vector<4x4xf32> to vector<4x1xf32>
    %271 = vector.extract_strided_slice %251 {offsets = [3, 0], sizes = [1, 32], strides = [1, 1]} : vector<4x32xf32> to vector<1x32xf32>
    %272 = vector.broadcast %270 : vector<4x1xf32> to vector<4x32xf32>
    %273 = vector.broadcast %271 : vector<1x32xf32> to vector<4x32xf32>
    %274 = arith.mulf %272, %273 : vector<4x32xf32>
    %275 = arith.addf %269, %274 : vector<4x32xf32>
    %276 = tpu.concatenate %275, %275, %275, %275 in 1 : vector<4x32xf32>, vector<4x32xf32>, vector<4x32xf32>, vector<4x32xf32> -> vector<4x128xf32>
    %c0_57 = arith.constant 0 : index
    %c0_58 = arith.constant 0 : index
    %277 = vector.load %arg3[%c0_57, %c0_58] : memref<4x640xf32, #tpu.memory_space<vmem>>, vector<4x128xf32>
    %278 = arith.addf %277, %276 : vector<4x128xf32>
    %cst_59 = arith.constant 0.000000e+00 : f32
    %279 = vector.broadcast %cst_59 : f32 to vector<4x128xf32>
    %280 = arith.maximumf %278, %279 : vector<4x128xf32>
    %c0_60 = arith.constant 0 : index
    %c0_61 = arith.constant 0 : index
    %281 = vector.load %arg3[%c0_60, %c0_61] : memref<4x640xf32, #tpu.memory_space<vmem>>, vector<4x128xf32>
    tpu.vector_store %arg3[%c0_60, %c0_61], %280 {strides = array<i32>} : memref<4x640xf32, #tpu.memory_space<vmem>>, vector<4x128xf32>,
    %c0_62 = arith.constant 0 : index
    %c128_63 = arith.constant 128 : index
    %282 = vector.load %arg3[%c0_62, %c128_63] : memref<4x640xf32, #tpu.memory_space<vmem>>, vector<4x128xf32>
    %283 = arith.addf %282, %276 : vector<4x128xf32>
    %cst_64 = arith.constant 0.000000e+00 : f32
    %284 = vector.broadcast %cst_64 : f32 to vector<4x128xf32>
    %285 = arith.maximumf %283, %284 : vector<4x128xf32>
    %c0_65 = arith.constant 0 : index
    %c128_66 = arith.constant 128 : index
    %286 = vector.load %arg3[%c0_65, %c128_66] : memref<4x640xf32, #tpu.memory_space<vmem>>, vector<4x128xf32>
    tpu.vector_store %arg3[%c0_65, %c128_66], %285 {strides = array<i32>} : memref<4x640xf32, #tpu.memory_space<vmem>>, vector<4x128xf32>,
    %c0_67 = arith.constant 0 : index
    %c256_68 = arith.constant 256 : index
    %287 = vector.load %arg3[%c0_67, %c256_68] : memref<4x640xf32, #tpu.memory_space<vmem>>, vector<4x128xf32>
    %288 = arith.addf %287, %276 : vector<4x128xf32>
    %cst_69 = arith.constant 0.000000e+00 : f32
    %289 = vector.broadcast %cst_69 : f32 to vector<4x128xf32>
    %290 = arith.maximumf %288, %289 : vector<4x128xf32>
    %c0_70 = arith.constant 0 : index
    %c256_71 = arith.constant 256 : index
    %291 = vector.load %arg3[%c0_70, %c256_71] : memref<4x640xf32, #tpu.memory_space<vmem>>, vector<4x128xf32>
    tpu.vector_store %arg3[%c0_70, %c256_71], %290 {strides = array<i32>} : memref<4x640xf32, #tpu.memory_space<vmem>>, vector<4x128xf32>,
    %c0_72 = arith.constant 0 : index
    %c384_73 = arith.constant 384 : index
    %292 = vector.load %arg3[%c0_72, %c384_73] : memref<4x640xf32, #tpu.memory_space<vmem>>, vector<4x128xf32>
    %293 = arith.addf %292, %276 : vector<4x128xf32>
    %cst_74 = arith.constant 0.000000e+00 : f32
    %294 = vector.broadcast %cst_74 : f32 to vector<4x128xf32>
    %295 = arith.maximumf %293, %294 : vector<4x128xf32>
    %c0_75 = arith.constant 0 : index
    %c384_76 = arith.constant 384 : index
    %296 = vector.load %arg3[%c0_75, %c384_76] : memref<4x640xf32, #tpu.memory_space<vmem>>, vector<4x128xf32>
    tpu.vector_store %arg3[%c0_75, %c384_76], %295 {strides = array<i32>} : memref<4x640xf32, #tpu.memory_space<vmem>>, vector<4x128xf32>,
    %c0_77 = arith.constant 0 : index
    %c512_78 = arith.constant 512 : index
    %297 = vector.load %arg3[%c0_77, %c512_78] : memref<4x640xf32, #tpu.memory_space<vmem>>, vector<4x128xf32>
    %298 = arith.addf %297, %276 : vector<4x128xf32>
    %cst_79 = arith.constant 0.000000e+00 : f32
    %299 = vector.broadcast %cst_79 : f32 to vector<4x128xf32>
    %300 = arith.maximumf %298, %299 : vector<4x128xf32>
    %c0_80 = arith.constant 0 : index
    %c512_81 = arith.constant 512 : index
    %301 = vector.load %arg3[%c0_80, %c512_81] : memref<4x640xf32, #tpu.memory_space<vmem>>, vector<4x128xf32>
    tpu.vector_store %arg3[%c0_80, %c512_81], %300 {strides = array<i32>} : memref<4x640xf32, #tpu.memory_space<vmem>>, vector<4x128xf32>,
    return
  }
}

</mosaic_0001>

<llo_original>
// kernel: broadcasted_block.1
$region0: #{broadcasted_block.1}
  #allocation0 [shape = 'u32[]', space=smem, size = 0x4, offset = 0x4, fixed_abs, tag = 'smem constant byte address 0x4 - core index']
  #allocation1 [shape = 'u32[144,128]{1,0:T(1,128)}', space=vmem, size = 0x12000, scoped, tag = 'internal scratch']
  %s0 = inlined_call_operand.vmem [shape: f32[4,640], index: 0, kind: input, shape index: {}]
  %s1 = inlined_call_operand.vmem [shape: f32[4,18], index: 1, kind: input, shape index: {}]
  %s2 = inlined_call_operand.vmem [shape: f32[4,4], index: 2, kind: input, shape index: {}]
  %s3 = inlined_call_operand.vmem [shape: f32[4,640], index: 3, kind: output, shape index: {}]
  %s4 = sld [smem:[#allocation0]]
  $region22: #{broadcasted_block.1} parent=0
    _
  %s6 = ssub.s32 1, %s4
  %s7 = scalar_select 0, %s6, %s4
  // Predicated region
  $region2: #{broadcasted_block.1} parent=0 // pred_check
    _
  $region3: #{broadcasted_block.1} parent=0 // pred_check_branch
    %9 = sbr.rel (0) target = $region5
  $region4: #{broadcasted_block.1} parent=0 // pred_region
    _
  $region5: #{broadcasted_block.1} parent=0 // pred_fallthru
    _
  // Predicated region
  $region6: #{broadcasted_block.1} parent=0 // pred_check
    _
  $region7: #{broadcasted_block.1} parent=0 // pred_check_branch
    %11 = sbr.rel (0) target = $region9
  $region8: #{broadcasted_block.1} parent=0 // pred_region
    _
  $region9: #{broadcasted_block.1} parent=0 // pred_fallthru
    _
  // Predicated region
  $region10: #{broadcasted_block.1} parent=0 // pred_check
    _
  $region11: #{broadcasted_block.1} parent=0 // pred_check_branch
    %13 = sbr.rel (0) target = $region13
  $region12: #{broadcasted_block.1} parent=0 // pred_region
    _
  $region13: #{broadcasted_block.1} parent=0 // pred_fallthru
    _
  %v14 = vld [vmem:[%s0] sm:$0xff]
  %v15 = vld [vmem:[%s0 + $0x8] sm:$0xff]
  %v16 = vld [vmem:[%s0 + $0x10] sm:$0xf]
  %v17 = vld [vmem:[%s1] sm:$0xf]
  %v21 = vcombine.high %v14, %v14
  %v22 = vcombine.high %v15, %v15
  %23 = vrot.lane.b32.xlu0 %v14, 32
  %v24 = vpop.permute.xlu0 %23
  %25 = vrot.lane.b32.xlu0 %v21, 32
  %v26 = vpop.permute.xlu0 %25
  %27 = vrot.lane.b32.xlu0 %v15, 32
  %v28 = vpop.permute.xlu0 %27
  %29 = vrot.lane.b32.xlu0 %v22, 32
  %v30 = vpop.permute.xlu0 %29
  %31 = vrot.lane.b32.xlu0 %v16, 32
  %v32 = vpop.permute.xlu0 %31
  %vm33 = vcmask 261120
  %v34 = vsel %vm33, %v24, %v26
  %v35 = vsel %vm33, %v26, %v28
  %v36 = vsel %vm33, %v28, %v30
  %v37 = vsel %vm33, %v30, %v32
  %v43 = vsel %vm33, 0.0, %v24
  %44 = vrot.lane.b32.xlu0 %v14, 96
  %v45 = vpop.permute.xlu0 %44
  %46 = vrot.lane.b32.xlu0 %v21, 96
  %v47 = vpop.permute.xlu0 %46
  %48 = vrot.lane.b32.xlu0 %v15, 96
  %v49 = vpop.permute.xlu0 %48
  %50 = vrot.lane.b32.xlu0 %v22, 96
  %v51 = vpop.permute.xlu0 %50
  %52 = vrot.lane.b32.xlu0 %v16, 96
  %v53 = vpop.permute.xlu0 %52
  %vm54 = vcmask 785408
  %v55 = vsel %vm54, %v45, %v47
  %v56 = vsel %vm54, %v47, %v49
  %v57 = vsel %vm54, %v49, %v51
  %v58 = vsel %vm54, %v51, %v53
  %v64 = vsel %vm54, %v53, 0.0
  %66 = vset.pattern.permute.xlu0 1
  %67 = vperm.xlu0 %66, %v17
  %v68 = vpop.permute.xlu0 %67
  %v72 = vmul.f32 %v68, %v14
  %v73 = vmul.f32 %v68, %v21
  %v74 = vmul.f32 %v68, %v15
  %v75 = vmul.f32 %v68, %v22
  %v76 = vmul.f32 %v68, %v16
  %77 = vset.pattern.permute.xlu0 0
  %78 = vperm.xlu0 %77, %v17
  %v79 = vpop.permute.xlu0 %78
  %v81 = vmul.f32 %v79, %v43
  %v82 = vmul.f32 %v79, %v34
  %v83 = vmul.f32 %v79, %v35
  %v84 = vmul.f32 %v79, %v36
  %v85 = vmul.f32 %v79, %v37
  %v86 = vadd.f32 %v72, %v81
  %v87 = vadd.f32 %v73, %v82
  %v88 = vadd.f32 %v74, %v83
  %v89 = vadd.f32 %v75, %v84
  %v90 = vadd.f32 %v76, %v85
  %91 = vset.pattern.permute.xlu0 2
  %92 = vperm.xlu0 %91, %v17
  %v93 = vpop.permute.xlu0 %92
  %v95 = vmul.f32 %v93, %v55
  %v96 = vmul.f32 %v93, %v56
  %v97 = vmul.f32 %v93, %v57
  %v98 = vmul.f32 %v93, %v58
  %v99 = vmul.f32 %v93, %v64
  %v100 = vadd.f32 %v86, %v95
  %v101 = vadd.f32 %v87, %v96
  %v102 = vadd.f32 %v88, %v97
  %v103 = vadd.f32 %v89, %v98
  %v104 = vadd.f32 %v90, %v99
  %vm105 = vcmask 1043456
  %v106 = vsel %vm105, %v100, 0.0
  %107 = vadd.xlane.f32.xlu0 %v106
  %v108 = vpop.xlane.xlu0 %107
  %v109 = vmul.f32 %v108, 0.0078125
  %v110 = vmul.f32 %v100, %v100
  %v111 = vsel %vm105, %v110, 0.0
  %112 = vadd.xlane.f32.xlu0 %v111
  %v113 = vpop.xlane.xlu0 %112
  %v114 = vmul.f32 %v113, 0.0078125
  %v115 = vmul.f32 %v109, %v109
  %v116 = vsub.f32 %v114, %v115
  %v117 = vmax.f32 %v116, 0.0
  %v118 = vadd.f32 %v117, 1e-05
  %v119 = vrsqrt.pop %v118
  %v120 = vmul.f32 %v17, %v119
  %v121 = vmul.f32 %v109, %v120
  %123 = vrot.lane.b32.xlu0 %v121, 5
  %v124 = vpop.permute.xlu0 %123
  %v126 = vsub.f32 %v17, %v124
  %128 = vset.pattern.permute.xlu0 6
  %129 = vperm.xlu0 %128, %v120
  %v130 = vpop.permute.xlu0 %129
  %v132 = vmul.f32 %v100, %v130
  %134 = vset.pattern.permute.xlu0 11
  %135 = vperm.xlu0 %134, %v126
  %v136 = vpop.permute.xlu0 %135
  %v138 = vadd.f32 %v132, %v136
  %v139 = vadd.f32 %v14, %v138
  %140 = vst [vmem:[%s3] sm:$0xf] %v139
  %v141 = vadd.f32 %v138, 0.0
  %v142 = vsel %vm105, %v101, 0.0
  %143 = vadd.xlane.f32.xlu0 %v142
  %v144 = vpop.xlane.xlu0 %143
  %v145 = vmul.f32 %v144, 0.0078125
  %v146 = vmul.f32 %v101, %v101
  %v147 = vsel %vm105, %v146, 0.0
  %148 = vadd.xlane.f32.xlu0 %v147
  %v149 = vpop.xlane.xlu0 %148
  %v150 = vmul.f32 %v149, 0.0078125
  %v151 = vmul.f32 %v145, %v145
  %v152 = vsub.f32 %v150, %v151
  %v153 = vmax.f32 %v152, 0.0
  %v154 = vadd.f32 %v153, 1e-05
  %v155 = vrsqrt.pop %v154
  %v156 = vmul.f32 %v17, %v155
  %v157 = vmul.f32 %v145, %v156
  %159 = vrot.lane.b32.xlu0 %v157, 5
  %v160 = vpop.permute.xlu0 %159
  %v162 = vsub.f32 %v17, %v160
  %164 = vset.pattern.permute.xlu0 7
  %165 = vperm.xlu0 %164, %v156
  %v166 = vpop.permute.xlu0 %165
  %v168 = vmul.f32 %v101, %v166
  %170 = vset.pattern.permute.xlu0 12
  %171 = vperm.xlu0 %170, %v162
  %v172 = vpop.permute.xlu0 %171
  %v174 = vadd.f32 %v168, %v172
  %v175 = vrot.slane %v14, 4
  %v177 = vadd.f32 %v175, %v174
  %178 = vst [vmem:[%s3 + $0x4] sm:$0xf] %v177
  %v179 = vadd.f32 %v141, %v174
  %v180 = vsel %vm105, %v102, 0.0
  %181 = vadd.xlane.f32.xlu0 %v180
  %v182 = vpop.xlane.xlu0 %181
  %v183 = vmul.f32 %v182, 0.0078125
  %v184 = vmul.f32 %v102, %v102
  %v185 = vsel %vm105, %v184, 0.0
  %186 = vadd.xlane.f32.xlu0 %v185
  %v187 = vpop.xlane.xlu0 %186
  %v188 = vmul.f32 %v187, 0.0078125
  %v189 = vmul.f32 %v183, %v183
  %v190 = vsub.f32 %v188, %v189
  %v191 = vmax.f32 %v190, 0.0
  %v192 = vadd.f32 %v191, 1e-05
  %v193 = vrsqrt.pop %v192
  %v194 = vmul.f32 %v17, %v193
  %v195 = vmul.f32 %v183, %v194
  %197 = vrot.lane.b32.xlu0 %v195, 5
  %v198 = vpop.permute.xlu0 %197
  %v200 = vsub.f32 %v17, %v198
  %202 = vset.pattern.permute.xlu0 8
  %203 = vperm.xlu0 %202, %v194
  %v204 = vpop.permute.xlu0 %203
  %v206 = vmul.f32 %v102, %v204
  %208 = vset.pattern.permute.xlu0 13
  %209 = vperm.xlu0 %208, %v200
  %v210 = vpop.permute.xlu0 %209
  %v212 = vadd.f32 %v206, %v210
  %v213 = vadd.f32 %v15, %v212
  %214 = vst [vmem:[%s3 + $0x8] sm:$0xf] %v213
  %v215 = vadd.f32 %v179, %v212
  %v216 = vsel %vm105, %v103, 0.0
  %217 = vadd.xlane.f32.xlu0 %v216
  %v218 = vpop.xlane.xlu0 %217
  %v219 = vmul.f32 %v218, 0.0078125
  %v220 = vmul.f32 %v103, %v103
  %v221 = vsel %vm105, %v220, 0.0
  %222 = vadd.xlane.f32.xlu0 %v221
  %v223 = vpop.xlane.xlu0 %222
  %v224 = vmul.f32 %v223, 0.0078125
  %v225 = vmul.f32 %v219, %v219
  %v226 = vsub.f32 %v224, %v225
  %v227 = vmax.f32 %v226, 0.0
  %v228 = vadd.f32 %v227, 1e-05
  %v229 = vrsqrt.pop %v228
  %v230 = vmul.f32 %v17, %v229
  %v231 = vmul.f32 %v219, %v230
  %233 = vrot.lane.b32.xlu0 %v231, 5
  %v234 = vpop.permute.xlu0 %233
  %v236 = vsub.f32 %v17, %v234
  %238 = vset.pattern.permute.xlu0 9
  %239 = vperm.xlu0 %238, %v230
  %v240 = vpop.permute.xlu0 %239
  %v242 = vmul.f32 %v103, %v240
  %244 = vset.pattern.permute.xlu0 14
  %245 = vperm.xlu0 %244, %v236
  %v246 = vpop.permute.xlu0 %245
  %v248 = vadd.f32 %v242, %v246
  %v249 = vrot.slane %v15, 4
  %v251 = vadd.f32 %v249, %v248
  %252 = vst [vmem:[%s3 + $0xc] sm:$0xf] %v251
  %v253 = vadd.f32 %v215, %v248
  %v254 = vsel %vm105, %v104, 0.0
  %255 = vadd.xlane.f32.xlu0 %v254
  %v256 = vpop.xlane.xlu0 %255
  %v257 = vmul.f32 %v256, 0.0078125
  %v258 = vmul.f32 %v104, %v104
  %v259 = vsel %vm105, %v258, 0.0
  %260 = vadd.xlane.f32.xlu0 %v259
  %v261 = vpop.xlane.xlu0 %260
  %v262 = vmul.f32 %v261, 0.0078125
  %v263 = vmul.f32 %v257, %v257
  %v264 = vsub.f32 %v262, %v263
  %v265 = vmax.f32 %v264, 0.0
  %v266 = vadd.f32 %v265, 1e-05
  %v267 = vrsqrt.pop %v266
  %v268 = vmul.f32 %v17, %v267
  %v269 = vmul.f32 %v257, %v268
  %271 = vrot.lane.b32.xlu0 %v269, 5
  %v272 = vpop.permute.xlu0 %271
  %v274 = vsub.f32 %v17, %v272
  %276 = vset.pattern.permute.xlu0 10
  %277 = vperm.xlu0 %276, %v268
  %v278 = vpop.permute.xlu0 %277
  %v280 = vmul.f32 %v104, %v278
  %282 = vset.pattern.permute.xlu0 15
  %283 = vperm.xlu0 %282, %v274
  %v284 = vpop.permute.xlu0 %283
  %v286 = vadd.f32 %v280, %v284
  %v287 = vadd.f32 %v16, %v286
  %288 = vst [vmem:[%s3 + $0x10] sm:$0xf] %v287
  %v289 = vadd.f32 %v253, %v286
  %291 = vrot.lane.b32.xlu0 %v289, 96
  %v292 = vpop.permute.xlu0 %291
  %v294 = vadd.f32 %v289, %v292
  %295 = vrot.lane.b32.xlu0 %v289, 64
  %v296 = vpop.permute.xlu0 %295
  %v298 = vadd.f32 %v294, %v296
  %299 = vrot.lane.b32.xlu0 %v289, 32
  %v300 = vpop.permute.xlu0 %299
  %v302 = vadd.f32 %v298, %v300
  %v303 = vmul.f32 %v302, 0.05
  %v304 = vlaneseq
  %v305 = vand.u32 %v304, 127
  %vm306 = vcmp.lt.s32.totalorder %v305, 0
  %v307 = vsub.s32 0, %v305
  %v308 = vsel %vm306, %v307, %v305
  %v309 = vshrl.u32 %v308, 4
  %v310 = vand.u32 %v308, 15
  %v311 = vsub.s32 0, %v310
  %v312 = vsel %vm306, %v311, %v310
  %vm313 = vcmp.ne.s32.totalorder %v312, 0
  %vm314 = vcmp.lt.s32.totalorder %v312, 0
  %vm315 = vmand %vm314, %vm313
  %v316 = vadd.s32 %v312, 16
  %v317 = vsel %vm315, %v316, %v312
  %vm318 = vcmp.eq.s32.totalorder %v317, 0
  %320 = vrot.lane.b32.xlu0 %v303, 1
  %v321 = vpop.permute.xlu0 %320
  %vm323 = vcmask 7168
  %v324 = vsel %vm323, 0.0, %v321
  %v325 = vsel %vm318, 0.0, %v324
  %vm326 = vcmp.eq.s32.totalorder %v317, 15
  %327 = vrot.lane.b32.xlu0 %v303, 127
  %v328 = vpop.permute.xlu0 %327
  %vm330 = vcmask 252928
  %v331 = vsel %vm330, %v328, 0.0
  %v332 = vsel %vm326, 0.0, %v331
  %333 = vset.pattern.permute.xlu0 4
  %334 = vperm.xlu0 %333, %v17
  %v335 = vpop.permute.xlu0 %334
  %v337 = vmul.f32 %v335, %v303
  %338 = vset.pattern.permute.xlu0 3
  %339 = vperm.xlu0 %338, %v17
  %v340 = vpop.permute.xlu0 %339
  %v342 = vmul.f32 %v340, %v325
  %v343 = vadd.f32 %v337, %v342
  %344 = vset.pattern.permute.xlu0 5
  %345 = vperm.xlu0 %344, %v17
  %v346 = vpop.permute.xlu0 %345
  %v348 = vmul.f32 %v346, %v332
  %v349 = vadd.f32 %v343, %v348
  %vm350 = vcmask 257024
  %v351 = vsel %vm350, %v349, 0.0
  %352 = vadd.xlane.f32.xlu0 %v351
  %v353 = vpop.xlane.xlu0 %352
  %v354 = vmul.f32 %v353, 0.03125
  %v355 = vmul.f32 %v349, %v349
  %v356 = vsel %vm350, %v355, 0.0
  %357 = vadd.xlane.f32.xlu0 %v356
  %v358 = vpop.xlane.xlu0 %357
  %v359 = vmul.f32 %v358, 0.03125
  %v360 = vmul.f32 %v354, %v354
  %v361 = vsub.f32 %v359, %v360
  %v362 = vmax.f32 %v361, 0.0
  %v363 = vadd.f32 %v362, 1e-05
  %v364 = vrsqrt.pop %v363
  %v365 = vmul.f32 %v17, %v364
  %v366 = vmul.f32 %v354, %v365
  %368 = vrot.lane.b32.xlu0 %v366, 1
  %v369 = vpop.permute.xlu0 %368
  %v371 = vsub.f32 %v17, %v369
  %373 = vset.pattern.permute.xlu0 16
  %374 = vperm.xlu0 %373, %v365
  %v375 = vpop.permute.xlu0 %374
  %v377 = vmul.f32 %v349, %v375
  %379 = vset.pattern.permute.xlu0 17
  %380 = vperm.xlu0 %379, %v371
  %v381 = vpop.permute.xlu0 %380
  %v383 = vadd.f32 %v377, %v381
  %v384 = vxor.u32 %v383, 2147483648
  %v385 = vmul.f32 %v384, 1.442695
  %v386 = vpow.pop %v385
  %v387 = vadd.f32 %v386, 1.0
  %v388 = vrcp.pop %v387
  %v389 = vmul.f32 1.0, %v388
  %v390 = vmul.f32 %v383, %v389
  %v391 = vld [vmem:[%s2] sm:$0xf]
  %393 = vset.pattern.permute.xlu0 0
  %394 = vperm.xlu0 %393, %v391
  %v395 = vpop.permute.xlu0 %394
  %v397 = vlaneseq
  %v398 = vshrl.u32 %v397, 7
  %v399 = vsub.s32 0, %v398
  %v400 = vrot.slane %v390, %v399
  %v401 = vmul.f32 %v395, %v400
  %402 = vset.pattern.permute.xlu0 1
  %403 = vperm.xlu0 %402, %v391
  %v404 = vpop.permute.xlu0 %403
  %v406 = vlaneseq
  %v407 = vshrl.u32 %v406, 7
  %v408 = vsub.s32 1, %v407
  %v409 = vrot.slane %v390, %v408
  %v410 = vmul.f32 %v404, %v409
  %v411 = vadd.f32 %v401, %v410
  %412 = vset.pattern.permute.xlu0 2
  %413 = vperm.xlu0 %412, %v391
  %v414 = vpop.permute.xlu0 %413
  %v416 = vlaneseq
  %v417 = vshrl.u32 %v416, 7
  %v418 = vsub.s32 2, %v417
  %v419 = vrot.slane %v390, %v418
  %v420 = vmul.f32 %v414, %v419
  %v421 = vadd.f32 %v411, %v420
  %422 = vset.pattern.permute.xlu0 3
  %423 = vperm.xlu0 %422, %v391
  %v424 = vpop.permute.xlu0 %423
  %v426 = vlaneseq
  %v427 = vshrl.u32 %v426, 7
  %v428 = vsub.s32 3, %v427
  %v429 = vrot.slane %v390, %v428
  %v430 = vmul.f32 %v424, %v429
  %v431 = vadd.f32 %v421, %v430
  %433 = vrot.lane.b32.xlu0 %v431, 32
  %v434 = vpop.permute.xlu0 %433
  %436 = vrot.lane.b32.xlu0 %v431, 64
  %v437 = vpop.permute.xlu0 %436
  %439 = vrot.lane.b32.xlu0 %v431, 96
  %v440 = vpop.permute.xlu0 %439
  %v442 = vsel %vm33, %v431, %v434
  %vm443 = vcmask 523264
  %v444 = vsel %vm443, %v442, %v437
  %v445 = vsel %vm54, %v444, %v440
  %v446 = vld [vmem:[%s3] sm:$0xf]
  %v447 = vadd.f32 %v446, %v445
  %v448 = vmax.f32 %v447, 0.0
  %449 = vst [vmem:[%s3] sm:$0xf] %v448
  %v450 = vld [vmem:[%s3 + $0x4] sm:$0xf]
  %v451 = vadd.f32 %v450, %v445
  %v452 = vmax.f32 %v451, 0.0
  %453 = vst [vmem:[%s3 + $0x4] sm:$0xf] %v452
  %v454 = vld [vmem:[%s3 + $0x8] sm:$0xf]
  %v455 = vadd.f32 %v454, %v445
  %v456 = vmax.f32 %v455, 0.0
  %457 = vst [vmem:[%s3 + $0x8] sm:$0xf] %v456
  %v458 = vld [vmem:[%s3 + $0xc] sm:$0xf]
  %v459 = vadd.f32 %v458, %v445
  %v460 = vmax.f32 %v459, 0.0
  %461 = vst [vmem:[%s3 + $0xc] sm:$0xf] %v460
  %v462 = vld [vmem:[%s3 + $0x10] sm:$0xf]
  %v463 = vadd.f32 %v462, %v445
  %v464 = vmax.f32 %v463, 0.0
  %465 = vst [vmem:[%s3 + $0x10] sm:$0xf] %v464
  // Predicated region
  $region14: #{broadcasted_block.1} parent=0 // pred_check
    _
  $region15: #{broadcasted_block.1} parent=0 // pred_check_branch
    %467 = sbr.rel (0) target = $region17
  $region16: #{broadcasted_block.1} parent=0 // pred_region
    _
  $region17: #{broadcasted_block.1} parent=0 // pred_fallthru
    _
  // Predicated region
  $region18: #{broadcasted_block.1} parent=0 // pred_check
    _
  $region19: #{broadcasted_block.1} parent=0 // pred_check_branch
    %469 = sbr.rel (0) target = $region21
  $region20: #{broadcasted_block.1} parent=0 // pred_region
    _
  $region21: #{broadcasted_block.1} parent=0 // pred_fallthru
    _

</llo_original>
